<compile_context>
chip_gen: v7x
topology: tpu7x:2x2x1
jax: 0.10.0
libtpu: 0.0.40
codegen_flags: <defaults>
</compile_context>

<pallas_src>
import functools
import math

import jax
import jax.numpy as jnp
from jax.experimental import pallas as pl
from jax.experimental.pallas import tpu as pltpu

# ----- synthetic module-level constants (TOKENS / MAX_LEN / PAD_TOKEN etc.) -----
PAD_TOKEN = "[pad]"
BOS_TOKEN = "[bos]"
EOS_TOKEN = "[eos]"
TOKENS = [PAD_TOKEN, BOS_TOKEN, EOS_TOKEN] + [f"tok{i}" for i in range(13)]  # vocab = 16
PAD_ID = 0  # token_to_id(TOKENS)[PAD_TOKEN]
MAX_LEN = 250
NEG_INF = -1e9      # stands in for float('-inf') additive attention mask
LN_EPS = 1e-5       # PyTorch LayerNorm / TransformerEncoderLayer default


def _round_up(x, m):
    return ((x + m - 1) // m) * m


def _row_tile(m):
    """Row tile for (M, ...) kernels: up to 256 rows per grid step, multiple of 8."""
    tm = min(256, _round_up(m, 8))
    return tm, _round_up(m, tm)


# ----------------------------- Pallas kernels -----------------------------
def _linear_kernel(x_ref, w_ref, b_ref, o_ref):
    # y = x @ W_t + b   (W passed pre-transposed: (K, N))
    acc = jnp.dot(x_ref[...], w_ref[...], preferred_element_type=jnp.float32)
    o_ref[...] = (acc + b_ref[...]).astype(o_ref.dtype)


def linear_pallas(x, w_t, b):
    M, K = x.shape
    N = w_t.shape[1]
    tm, M_pad = _row_tile(M)
    x_p = jnp.pad(x, ((0, M_pad - M), (0, 0))) if M_pad != M else x
    out = pl.pallas_call(
        _linear_kernel,
        grid=(M_pad // tm,),
        in_specs=[
            pl.BlockSpec((tm, K), lambda i: (i, 0)),
            pl.BlockSpec((K, N), lambda i: (0, 0)),
            pl.BlockSpec((1, N), lambda i: (0, 0)),
        ],
        out_specs=pl.BlockSpec((tm, N), lambda i: (i, 0)),
        out_shape=jax.ShapeDtypeStruct((M_pad, N), jnp.float32),
        compiler_params=pltpu.CompilerParams(dimension_semantics=("parallel",)),
    )(x_p, w_t, b.reshape(1, N))
    return out[:M] if M_pad != M else out


def _attn_layer_kernel(x_ref, qkv_ref, dbias_ref, padb_ref, wo_ref, bo_ref,
                       g_ref, b_ref, o_ref, *, nhead, scale):
    """Multi-head attention (all heads) + out-proj + residual + LayerNorm1, one batch element."""
    S, E = o_ref.shape
    Dh = E // nhead

    qkv = qkv_ref[...]          # (S, 3E)
    wo = wo_ref[...]            # (E, E)  == out_proj.weight^T

    # causal + key-padding additive masks, built in-kernel (no (B,H,S,S) HBM tensor)
    rows = jax.lax.broadcasted_iota(jnp.int32, (S, S), 0)
    cols = jax.lax.broadcasted_iota(jnp.int32, (S, S), 1)
    key_bias = jnp.where(cols > rows, NEG_INF, 0.0) + padb_ref[...]   # (S, S)

    acc = jnp.zeros((S, E), jnp.float32)
    for h in range(nhead):
        q = qkv[:, h * Dh:(h + 1) * Dh]                 # (S, Dh)
        k = qkv[:, E + h * Dh:E + (h + 1) * Dh]         # (S, Dh)
        v = qkv[:, 2 * E + h * Dh:2 * E + (h + 1) * Dh]  # (S, Dh)
        s = jax.lax.dot_general(
            q, k, (((1,), (1,)), ((), ())), preferred_element_type=jnp.float32
        ) * scale
        s = s + dbias_ref[h] + key_bias                 # distance + causal + pad
        m = jnp.max(s, axis=-1, keepdims=True)
        p = jnp.exp(s - m)
        denom = jnp.sum(p, axis=-1, keepdims=True)
        p = p * pl.reciprocal(denom, approx=True)       # EUP slot (nearly free)
        o_h = jnp.dot(p, v, preferred_element_type=jnp.float32)   # (S, Dh)
        # fold out-projection into the epilogue: concat(heads) @ Wo == sum_h o_h @ Wo[h*Dh:(h+1)*Dh]
        acc = acc + jnp.dot(o_h, wo[h * Dh:(h + 1) * Dh, :],
                            preferred_element_type=jnp.float32)

    # residual + LayerNorm1 (post-norm encoder layer)
    y = x_ref[...] + acc + bo_ref[...]
    mu = jnp.mean(y, axis=-1, keepdims=True)
    var = jnp.mean(jnp.square(y - mu), axis=-1, keepdims=True)
    o_ref[...] = ((y - mu) * jax.lax.rsqrt(var + LN_EPS) * g_ref[...] + b_ref[...]
                  ).astype(o_ref.dtype)


def attn_block_pallas(x, qkv, dbias, pad_bias, wo_t, bo, gamma, beta, nhead):
    B, S, E = x.shape
    H = nhead
    scale = 1.0 / math.sqrt(E // nhead)
    kernel = functools.partial(_attn_layer_kernel, nhead=nhead, scale=scale)
    return pl.pallas_call(
        kernel,
        grid=(B,),
        in_specs=[
            pl.BlockSpec((pl.Squeezed(), S, E), lambda b: (b, 0, 0)),      # x residual
            pl.BlockSpec((pl.Squeezed(), S, 3 * E), lambda b: (b, 0, 0)),  # qkv
            pl.BlockSpec((H, S, S), lambda b: (0, 0, 0)),                  # distance bias
            pl.BlockSpec((pl.Squeezed(), 1, S), lambda b: (b, 0, 0)),      # key-padding bias
            pl.BlockSpec((E, E), lambda b: (0, 0)),                        # out_proj W^T
            pl.BlockSpec((1, E), lambda b: (0, 0)),                        # out_proj b
            pl.BlockSpec((1, E), lambda b: (0, 0)),                        # ln1 gamma
            pl.BlockSpec((1, E), lambda b: (0, 0)),                        # ln1 beta
        ],
        out_specs=pl.BlockSpec((pl.Squeezed(), S, E), lambda b: (b, 0, 0)),
        out_shape=jax.ShapeDtypeStruct((B, S, E), jnp.float32),
        compiler_params=pltpu.CompilerParams(dimension_semantics=("parallel",)),
    )(x, qkv, dbias, pad_bias, wo_t,
      bo.reshape(1, E), gamma.reshape(1, E), beta.reshape(1, E))


def _ffn_ln_kernel(h_ref, w1_ref, b1_ref, w2_ref, b2_ref, g_ref, b_ref, o_ref):
    # fused: linear1 -> exact (erf) GELU -> linear2 -> residual add -> LayerNorm2
    h = h_ref[...]
    t = jnp.dot(h, w1_ref[...], preferred_element_type=jnp.float32) + b1_ref[...]
    t = 0.5 * t * (1.0 + jax.lax.erf(t * (1.0 / math.sqrt(2.0))))  # == torch F.gelu
    ff = jnp.dot(t, w2_ref[...], preferred_element_type=jnp.float32) + b2_ref[...]
    y = h + ff
    mu = jnp.mean(y, axis=-1, keepdims=True)
    var = jnp.mean(jnp.square(y - mu), axis=-1, keepdims=True)
    o_ref[...] = ((y - mu) * jax.lax.rsqrt(var + LN_EPS) * g_ref[...] + b_ref[...]
                  ).astype(o_ref.dtype)


def ffn_ln_pallas(h, w1_t, b1, w2_t, b2, gamma, beta):
    M, E = h.shape
    F = w1_t.shape[1]
    tm, M_pad = _row_tile(M)
    h_p = jnp.pad(h, ((0, M_pad - M), (0, 0))) if M_pad != M else h
    out = pl.pallas_call(
        _ffn_ln_kernel,
        grid=(M_pad // tm,),
        in_specs=[
            pl.BlockSpec((tm, E), lambda i: (i, 0)),
            pl.BlockSpec((E, F), lambda i: (0, 0)),
            pl.BlockSpec((1, F), lambda i: (0, 0)),
            pl.BlockSpec((F, E), lambda i: (0, 0)),
            pl.BlockSpec((1, E), lambda i: (0, 0)),
            pl.BlockSpec((1, E), lambda i: (0, 0)),
            pl.BlockSpec((1, E), lambda i: (0, 0)),
        ],
        out_specs=pl.BlockSpec((tm, E), lambda i: (i, 0)),
        out_shape=jax.ShapeDtypeStruct((M_pad, E), jnp.float32),
        compiler_params=pltpu.CompilerParams(dimension_semantics=("parallel",)),
    )(h_p, w1_t, b1.reshape(1, F), w2_t, b2.reshape(1, E),
      gamma.reshape(1, E), beta.reshape(1, E))
    return out[:M] if M_pad != M else out


def _ln_linear_kernel(x_ref, g_ref, b_ref, w_ref, bias_ref, o_ref):
    # fused: final encoder LayerNorm -> generator projection (lane-padded vocab)
    x = x_ref[...]
    mu = jnp.mean(x, axis=-1, keepdims=True)
    var = jnp.mean(jnp.square(x - mu), axis=-1, keepdims=True)
    y = (x - mu) * jax.lax.rsqrt(var + LN_EPS) * g_ref[...] + b_ref[...]
    o_ref[...] = (jnp.dot(y, w_ref[...], preferred_element_type=jnp.float32)
                  + bias_ref[...]).astype(o_ref.dtype)


def final_ln_generator_pallas(x, gamma, beta, gen_w_t, gen_b):
    M, E = x.shape
    V = gen_w_t.shape[1]
    N = _round_up(V, 128)                      # lane-dense, unmasked stores
    w_p = jnp.pad(gen_w_t, ((0, 0), (0, N - V)))
    b_p = jnp.pad(gen_b, ((0, N - V),))
    tm, M_pad = _row_tile(M)
    x_p = jnp.pad(x, ((0, M_pad - M), (0, 0))) if M_pad != M else x
    out = pl.pallas_call(
        _ln_linear_kernel,
        grid=(M_pad // tm,),
        in_specs=[
            pl.BlockSpec((tm, E), lambda i: (i, 0)),
            pl.BlockSpec((1, E), lambda i: (0, 0)),
            pl.BlockSpec((1, E), lambda i: (0, 0)),
            pl.BlockSpec((E, N), lambda i: (0, 0)),
            pl.BlockSpec((1, N), lambda i: (0, 0)),
        ],
        out_specs=pl.BlockSpec((tm, N), lambda i: (i, 0)),
        out_shape=jax.ShapeDtypeStruct((M_pad, N), jnp.float32),
        compiler_params=pltpu.CompilerParams(dimension_semantics=("parallel",)),
    )(x_p, gamma.reshape(1, E), beta.reshape(1, E), w_p, b_p.reshape(1, N))
    return out[:M, :V]


# ------------------------------- JAX glue ---------------------------------
def init_params(key, num_layers, emb_size, nhead, dim_ff, vocab):
    def dense(k, shape, scale=0.02):
        return scale * jax.random.normal(k, shape, dtype=jnp.float32)

    keys = iter(jax.random.split(key, 3 + 4 * num_layers))
    params = {
        "tok_emb": dense(next(keys), (vocab, emb_size), 1.0),
        "dist_emb": dense(next(keys), (MAX_LEN + 1, nhead), 1.0),
        "gen_w": dense(next(keys), (emb_size, vocab)),   # generator weight, pre-transposed
        "gen_b": jnp.zeros((vocab,), jnp.float32),
        "fn_g": jnp.ones((emb_size,), jnp.float32),      # final encoder LayerNorm
        "fn_b": jnp.zeros((emb_size,), jnp.float32),
        "layers": [],
    }
    for _ in range(num_layers):
        k_in, k_out, k_w1, k_w2 = (next(keys), next(keys), next(keys), next(keys))
        params["layers"].append({
            "in_w": dense(k_in, (emb_size, 3 * emb_size)),   # in_proj_weight^T
            "in_b": jnp.zeros((3 * emb_size,), jnp.float32),
            "out_w": dense(k_out, (emb_size, emb_size)),     # out_proj.weight^T
            "out_b": jnp.zeros((emb_size,), jnp.float32),
            "w1": dense(k_w1, (emb_size, dim_ff)),           # linear1.weight^T
            "b1": jnp.zeros((dim_ff,), jnp.float32),
            "w2": dense(k_w2, (dim_ff, emb_size)),           # linear2.weight^T
            "b2": jnp.zeros((emb_size,), jnp.float32),
            "ln1_g": jnp.ones((emb_size,), jnp.float32),
            "ln1_b": jnp.zeros((emb_size,), jnp.float32),
            "ln2_g": jnp.ones((emb_size,), jnp.float32),
            "ln2_b": jnp.zeros((emb_size,), jnp.float32),
        })
    return params


def smiles_generator_forward(params, sequences, nhead):
    B, S = sequences.shape
    V, E = params["tok_emb"].shape

    # TokenEmbedding: embedding(tokens) * sqrt(emb_size); dropouts identity (eval)
    x = jnp.take(params["tok_emb"], sequences, axis=0) * math.sqrt(E)     # (B, S, E)

    # batch-independent distance bias (H, S, S) — computed ONCE, not per (b, h)
    idx = jnp.arange(S)
    dist = jnp.minimum(jnp.abs(idx[None, :] - idx[:, None]), MAX_LEN)
    dbias = jnp.transpose(params["dist_emb"][dist], (2, 0, 1)).astype(jnp.float32)

    # key-padding additive bias (B, 1, S)
    pad_bias = jnp.where(sequences == PAD_ID, NEG_INF, 0.0).astype(jnp.float32)
    pad_bias = pad_bias.reshape(B, 1, S)

    for layer in params["layers"]:
        # fused QKV projection (row-tiled linear)
        qkv = linear_pallas(x.reshape(B * S, E), layer["in_w"], layer["in_b"])
        qkv = qkv.reshape(B, S, 3 * E)
        # attention (all heads) + out-proj + residual + LayerNorm1, per batch element
        x = attn_block_pallas(x, qkv, dbias, pad_bias,
                              layer["out_w"], layer["out_b"],
                              layer["ln1_g"], layer["ln1_b"], nhead)       # (B, S, E)
        # FFN + residual + LayerNorm2 (fused)
        h = ffn_ln_pallas(x.reshape(B * S, E), layer["w1"], layer["b1"],
                          layer["w2"], layer["b2"], layer["ln2_g"], layer["ln2_b"])
        x = h.reshape(B, S, E)

    # fused final encoder LayerNorm + generator linear (vocab padded to 128 lanes)
    logits = final_ln_generator_pallas(x.reshape(B * S, E), params["fn_g"],
                                       params["fn_b"], params["gen_w"], params["gen_b"])
    return logits.reshape(B, S, V)


if __name__ == "__main__":
    key = jax.random.PRNGKey(0)
    B, S = 2, 8
    num_layers, emb_size, nhead, dim_ff = 2, 32, 4, 64
    vocab = len(TOKENS)

    pkey, skey = jax.random.split(key)
    params = init_params(pkey, num_layers, emb_size, nhead, dim_ff, vocab)

    sequences = jax.random.randint(skey, (B, S), 3, vocab, dtype=jnp.int32)
    sequences = sequences.at[:, 0].set(1)         # BOS token
    sequences = sequences.at[1, -2:].set(PAD_ID)  # a few PADs -> exercises key_padding_mask

    logits = smiles_generator_forward(params, sequences, nhead)
    jax.block_until_ready(logits)
    assert logits.shape == (B, S, vocab)
    assert bool(jnp.all(jnp.isfinite(logits)))
    print("KERNEL_OK")
</pallas_src>

<mosaic_0001>
module attributes {stable_mosaic.version = 11 : i64} {
  func.func @_linear_kernel(%arg0: i32, %arg1: memref<16x32xf32, #tpu.memory_space<vmem>>, %arg2: memref<32x96xf32, #tpu.memory_space<vmem>>, %arg3: memref<1x96xf32, #tpu.memory_space<vmem>>, %arg4: memref<16x96xf32, #tpu.memory_space<vmem>>) attributes {dimension_semantics = [#tpu.dimension_semantics<parallel>], iteration_bounds = array<i64: 1>, scalar_prefetch = 0 : i64, scratch_operands = 0 : i64, tpu.core_type = #tpu.core_type<tc>, window_params = [{transform_indices = @transform_0, window_bounds = array<i64: 16, 32>}, {pipeline_mode = #tpu.pipeline_mode<synchronous>, transform_indices = @transform_1, window_bounds = array<i64: 32, 96>}, {pipeline_mode = #tpu.pipeline_mode<synchronous>, transform_indices = @transform_2, window_bounds = array<i64: 1, 96>}, {transform_indices = @transform_3, window_bounds = array<i64: 16, 96>}]} {
    %c0 = arith.constant 0 : index
    %c0_0 = arith.constant 0 : index
    %0 = vector.load %arg1[%c0, %c0_0] : memref<16x32xf32, #tpu.memory_space<vmem>>, vector<16x32xf32>
    %c0_1 = arith.constant 0 : index
    %c0_2 = arith.constant 0 : index
    %1 = vector.load %arg2[%c0_1, %c0_2] : memref<32x96xf32, #tpu.memory_space<vmem>>, vector<32x96xf32>
    %cst = arith.constant dense<0.000000e+00> : vector<16x96xf32>
    %2 = tpu.matmul %0, %1, %cst {dimension_numbers = #tpu.dot_dimension_numbers<[1], [0], [0], [1], [0, 0, 1, 1], [], []>} : vector<16x32xf32>, vector<32x96xf32>, vector<16x96xf32> -> vector<16x96xf32>
    %c0_3 = arith.constant 0 : index
    %c0_4 = arith.constant 0 : index
    %3 = vector.load %arg3[%c0_3, %c0_4] : memref<1x96xf32, #tpu.memory_space<vmem>>, vector<1x96xf32>
    %4 = vector.broadcast %3 : vector<1x96xf32> to vector<16x96xf32>
    %5 = arith.addf %2, %4 : vector<16x96xf32>
    %c0_5 = arith.constant 0 : index
    %c0_6 = arith.constant 0 : index
    %6 = vector.load %arg4[%c0_5, %c0_6] : memref<16x96xf32, #tpu.memory_space<vmem>>, vector<16x96xf32>
    tpu.vector_store %arg4[%c0_5, %c0_6], %5 {strides = array<i32>} : memref<16x96xf32, #tpu.memory_space<vmem>>, vector<16x96xf32>,
    return
  }
  func.func @transform_0(%arg0: i32) -> (i32, i32) {
    %c0_i32 = arith.constant 0 : i32
    %c0_i32_0 = arith.constant 0 : i32
    return %arg0, %c0_i32 : i32, i32
  }
  func.func @transform_1(%arg0: i32) -> (i32, i32) {
    %c0_i32 = arith.constant 0 : i32
    %c0_i32_0 = arith.constant 0 : i32
    %c0_i32_1 = arith.constant 0 : i32
    return %c0_i32, %c0_i32_0 : i32, i32
  }
  func.func @transform_2(%arg0: i32) -> (i32, i32) {
    %c0_i32 = arith.constant 0 : i32
    %c0_i32_0 = arith.constant 0 : i32
    %c0_i32_1 = arith.constant 0 : i32
    return %c0_i32, %c0_i32_0 : i32, i32
  }
  func.func @transform_3(%arg0: i32) -> (i32, i32) {
    %c0_i32 = arith.constant 0 : i32
    %c0_i32_0 = arith.constant 0 : i32
    return %arg0, %c0_i32 : i32, i32
  }
}

</mosaic_0001>

<llo_original>
// kernel: tpu_custom_call.1
$region0: #{tpu_custom_call.1}
  #allocation0 [shape = 'u32[]', space=smem, size = 0x4, offset = 0x4, fixed_abs, tag = 'smem constant byte address 0x4 - core index']
  #allocation1 [shape = 'u32[144,128]{1,0:T(1,128)}', space=vmem, size = 0x12000, scoped, tag = 'internal scratch']
  %s0 = inlined_call_operand.hbm [shape: f32[16,32], index: 0, kind: input, shape index: {}]
  %s1 = inlined_call_operand.hbm [shape: f32[32,96], index: 1, kind: input, shape index: {}]
  %s2 = inlined_call_operand.vmem [shape: f32[1,96], index: 2, kind: input, shape index: {}]
  %s3 = inlined_call_operand.hbm [shape: f32[16,96], index: 3, kind: output, shape index: {}]
  %s4 = sld [smem:[#allocation0]]
  $region30: #{tpu_custom_call.1} parent=0
    _
  %s6 = ssub.s32 1, %s4
  %s7 = scalar_select 0, %s6, %s4
  $region1: #{tpu_custom_call.1} parent=0
    #allocation2 [shape = 'u8[8192]{0}', space=vmem, size = 0x2000, scoped, tag = 'input window, operand 0, single buffered']
    #allocation3 [shape = 's32[1]{0}', space=sflag, size = 0x4, scoped, tag = 'scoped memory for tpu_custom_call.1']
    #allocation4 [shape = 's32[1]{0}', space=sflag, size = 0x4, scoped, tag = 'scoped memory for tpu_custom_call.1']
    #allocation5 [shape = 'u8[16384]{0}', space=vmem, size = 0x4000, scoped, tag = 'input window, operand 1, single buffered']
    #allocation6 [shape = 's32[1]{0}', space=sflag, size = 0x4, scoped, tag = 'scoped memory for tpu_custom_call.1']
    #allocation7 [shape = 'u8[8192]{0}', space=vmem, size = 0x2000, scoped, tag = 'output window, operand 0, single buffered']
    %8 = vsyncpa [#allocation3], 0
    %9 = vsyncpa [#allocation6], 0
    %10 = vsyncpa [#allocation4], 0
    // Predicated region
    $region2: #{tpu_custom_call.1} parent=1 // pred_check
      _
    $region3: #{tpu_custom_call.1} parent=1 // pred_check_branch
      %12 = sbr.rel (0) target = $region5
    $region4: #{tpu_custom_call.1} parent=1 // pred_region
      %s14 = ssub.s32 256, 256
      %15 = vsyncadd [#allocation3], %s14
      %s16 = sshll.u32 [#allocation2], 4
      %s17 = int_to_ptr.vmem [resolvable:$true] %s16
      %22 = dma.hbm_to_vmem [thread:$0]  %s0, 256, %s17, [#allocation3], 128, 128, 8
    $region5: #{tpu_custom_call.1} parent=1 // pred_fallthru
      _
    // Predicated region
    $region6: #{tpu_custom_call.1} parent=1 // pred_check
      _
    $region7: #{tpu_custom_call.1} parent=1 // pred_check_branch
      %24 = sbr.rel (0) target = $region9
    $region8: #{tpu_custom_call.1} parent=1 // pred_region
      %s26 = ssub.s32 512, 512
      %27 = vsyncadd [#allocation6], %s26
      %s28 = sshll.u32 [#allocation5], 4
      %s29 = int_to_ptr.vmem [resolvable:$true] %s28
      %34 = dma.hbm_to_vmem [thread:$0]  %s1, 512, %s29, [#allocation6], 128, 128, 8
    $region9: #{tpu_custom_call.1} parent=1 // pred_fallthru
      _
    // Predicated region
    $region10: #{tpu_custom_call.1} parent=1 // pred_check
      _
    $region11: #{tpu_custom_call.1} parent=1 // pred_check_branch
      %36 = sbr.rel (0) target = $region13
    $region12: #{tpu_custom_call.1} parent=1 // pred_region
      _
    $region13: #{tpu_custom_call.1} parent=1 // pred_fallthru
      _
    // Predicated region
    $region14: #{tpu_custom_call.1} parent=1 // pred_check
      _
    $region15: #{tpu_custom_call.1} parent=1 // pred_check_branch
      %38 = sbr.rel (0) target = $region17
    $region16: #{tpu_custom_call.1} parent=1 // pred_region
      %39 = dma.done [#allocation3], 256
    $region17: #{tpu_custom_call.1} parent=1 // pred_fallthru
      _
    // Predicated region
    $region18: #{tpu_custom_call.1} parent=1 // pred_check
      _
    $region19: #{tpu_custom_call.1} parent=1 // pred_check_branch
      %41 = sbr.rel (0) target = $region21
    $region20: #{tpu_custom_call.1} parent=1 // pred_region
      %42 = dma.done [#allocation6], 512
    $region21: #{tpu_custom_call.1} parent=1 // pred_fallthru
      _
    %v43 = vld [vmem:[#allocation2] sm:$0xff]
    %v44 = vld [vmem:[#allocation2 + $0x8] sm:$0xff]
    %v45 = vld [vmem:[#allocation5] sm:$0xff]
    %v46 = vld [vmem:[#allocation5 + $0x8] sm:$0xff]
    %v47 = vld [vmem:[#allocation5 + $0x10] sm:$0xff]
    %v48 = vld [vmem:[#allocation5 + $0x18] sm:$0xff]
    %v49 = vld [vmem:[%s2] sm:$0x1]
    %v51 = vlaneseq
    %v52 = vshrl.u32 %v51, 7
    %v53 = vsub.s32 0, %v52
    %v54 = vrot.slane %v49, %v53
    %vm56 = vcmask 261120
    %v58 = vsel %vm56, %v43, 0
    %v61 = vsel %vm56, %v44, 0
    %63 = vmatprep.subr.mxu0 0.0
    %64 = vmatpush1.msra.mxu0 %v45
    %65 = vmatprep.subr.mxu0 0.0
    %66 = vmatpush1.msra.mxu0 %v46
    %67 = vmatprep.subr.mxu0 0.0
    %68 = vmatpush1.msra.mxu0 %v47
    %69 = vmatprep.subr.mxu0 0.0
    %70 = vmatpush1.msra.mxu0 %v48
    %71 = vmatprep.subr.mxu0 0.0
    %72 = vmatpush1.msra.mxu0 0.0
    %73 = vmatprep.subr.mxu0 0.0
    %74 = vmatpush1.msra.mxu0 0.0
    %75 = vmatprep.subr.mxu0 0.0
    %76 = vmatpush1.msra.mxu0 0.0
    %77 = vmatprep.subr.mxu0 0.0
    %78 = vmatpush1.msra.mxu0 0.0
    %79 = vmatprep.subr.mxu0 0.0
    %80 = vmatpush1.msra.mxu0 0.0
    %81 = vmatprep.subr.mxu0 0.0
    %82 = vmatpush1.msra.mxu0 0.0
    %83 = vmatprep.subr.mxu0 0.0
    %84 = vmatpush1.msra.mxu0 0.0
    %85 = vmatprep.subr.mxu0 0.0
    %86 = vmatpush1.msra.mxu0 0.0
    %87 = vmatprep.subr.mxu0 0.0
    %88 = vmatpush1.msra.mxu0 0.0
    %89 = vmatprep.subr.mxu0 0.0
    %90 = vmatpush1.msra.mxu0 0.0
    %91 = vmatprep.subr.mxu0 0.0
    %92 = vmatpush1.msra.mxu0 0.0
    %93 = vmatprep.subr.mxu0 0.0
    %94 = vmatpush1.msra.mxu0 0.0
    %95 = vmatprep.subr.mxu0 0.0
    %96 = vmatpush1.msra.mxu0 0.0
    %97 = vmatprep.subr.mxu0 0.0
    %98 = vmatpush1.msra.mxu0 0.0
    %99 = vmatprep.subr.mxu0 0.0
    %100 = vmatpush1.msra.mxu0 0.0
    %101 = vmatprep.subr.mxu0 0.0
    %102 = vmatpush1.msra.mxu0 0.0
    %103 = vmatprep.subr.mxu0 0.0
    %104 = vmatpush1.msra.mxu0 0.0
    %105 = vmatprep.subr.mxu0 0.0
    %106 = vmatpush1.msra.mxu0 0.0
    %107 = vmatprep.subr.mxu0 0.0
    %108 = vmatpush1.msra.mxu0 0.0
    %109 = vmatprep.subr.mxu0 0.0
    %110 = vmatpush1.msra.mxu0 0.0
    %111 = vmatprep.subr.mxu0 0.0
    %112 = vmatpush1.msra.mxu0 0.0
    %113 = vmatprep.subr.mxu0 0.0
    %114 = vmatpush1.msra.mxu0 0.0
    %115 = vmatprep.subr.mxu0 0.0
    %116 = vmatpush1.msra.mxu0 0.0
    %117 = vmatprep.subr.mxu0 0.0
    %118 = vmatpush1.msra.mxu0 0.0
    %119 = vmatprep.subr.mxu0 0.0
    %120 = vmatpush1.msra.mxu0 0.0
    %121 = vmatprep.subr.mxu0 0.0
    %122 = vmatpush1.msra.mxu0 0.0
    %123 = vmatprep.subr.mxu0 0.0
    %124 = vmatpush1.msra.mxu0 0.0
    %125 = vmatprep.subr.mxu0 0.0
    %126 = vmatpush1.msra.mxu0 0.0
    %127 = vmatprep.mubr.f32.mxu0 0.0
    %128 = vmatmul.mubr.f32.gmra.mrb[0].mxu0 %v58
    %v129 = vpop.f32.mrb[0].mxu0
    %v130 = vadd.f32 %v54, %v129
    %v131 = vpop.f32.mrb[0].mxu0
    %132 = vmatprep.mubr.f32.mxu0 0.0
    %133 = vmatmul.mubr.f32.gmra.mrb[0].mxu0 %v61
    %v134 = vpop.f32.mrb[0].mxu0
    %v135 = vadd.f32 %v54, %v134
    %v136 = vpop.f32.mrb[0].mxu0
    %137 = vdwg.mxu0
    %vm138 = vcmask 785408
    %139 = vst.msk [vmem:[#allocation7] sm:$0xff] %vm138, %v130
    %140 = vst.msk [vmem:[#allocation7 + $0x8] sm:$0xff] %vm138, %v135
    // Predicated region
    $region22: #{tpu_custom_call.1} parent=1 // pred_check
      _
    $region23: #{tpu_custom_call.1} parent=1 // pred_check_branch
      %142 = sbr.rel (0) target = $region25
    $region24: #{tpu_custom_call.1} parent=1 // pred_region
      %s144 = ssub.s32 256, 256
      %145 = vsyncadd [#allocation4], %s144
      %s146 = sshll.u32 [#allocation7], 4
      %s147 = int_to_ptr.vmem [resolvable:$true] %s146
      %152 = dma.vmem_to_hbm [thread:$0]  %s147, 256, %s3, [#allocation4], 128, 128, 8
    $region25: #{tpu_custom_call.1} parent=1 // pred_fallthru
      _
    // Predicated region
    $region26: #{tpu_custom_call.1} parent=1 // pred_check
      _
    $region27: #{tpu_custom_call.1} parent=1 // pred_check_branch
      %154 = sbr.rel (0) target = $region29
    $region28: #{tpu_custom_call.1} parent=1 // pred_region
      %155 = dma.done [#allocation4], 256
    $region29: #{tpu_custom_call.1} parent=1 // pred_fallthru
      _
    %156 = vsyncpa [#allocation3], 1
    %157 = vsyncpa [#allocation6], 1
    %158 = vsyncpa [#allocation4], 1

</llo_original>
